<compile_context>
chip_gen: v5e
topology: v5e:2x2
jax: 0.10.0
libtpu: 0.0.40
codegen_flags: <defaults>
</compile_context>

<pallas_src>
import math

import jax
import jax.numpy as jnp
from jax.experimental import pallas as pl
from jax.experimental.pallas import tpu as pltpu

# ---- static geometry of the module -----------------------------------------
H1 = 28                                   # input spatial size
K2, S2, PD2 = 3, 2, 1                     # conv2: 3x3, stride 2, pad 1
H2 = (H1 + 2 * PD2 - K2) // S2 + 1        # 14
K3, S3, PD3 = 2, 2, 1                     # conv3: 2x2, stride 2, pad 1
H3 = (H2 + 2 * PD3 - K3) // S3 + 1        # 8
C1, C2, C3 = 3, 8, 12                     # channel widths of the three convs
T2, T3 = K2 * K2, K3 * K3                 # taps per conv (9, 4)
NTAP = T3 * T2                            # 36 input pixels feed one output pixel
KDIM = NTAP * C1                          # 108 = conv2 contraction (t3, t2, c1)

# ---- row offsets inside the packed parameter slab (all sublane-aligned) -----
R_W1 = 0                                  # (KDIM, NTAP) conv1 matmul; col NTAP = b1
R_W2 = 112                                # (T3*C2, KDIM) block-diag conv2 weights
R_B2 = 144                                # (T3*C2, np3) conv2 effective bias
R_B3 = 176                                # (C3, np3)    conv3 effective bias
R_W3 = 192                                # (C3, T3*C2)  conv3 weights
PARAM_ROWS = 208


# ---- the fused kernel --------------------------------------------------------
def _fused_conv_tanh_kernel(p_ref, prm_ref, o_ref):
    """p_ref: (NTAP, np3) input pixels; prm_ref: (PARAM_ROWS, W) packed params;
    o_ref: (C3, np3) output, column index = n*64 + h3*8 + w3 (lane-dense)."""
    np3 = p_ref.shape[1]
    f32 = jnp.float32
    # conv1 (1x1, 1->3) + tanh, expressed as a single matmul over the 36 taps.
    w1m = prm_ref[R_W1:R_W1 + KDIM, 0:NTAP]                     # (108, 36)
    b1c = prm_ref[R_W1:R_W1 + KDIM, NTAP:NTAP + 1]              # (108, 1)
    v2 = jnp.tanh(jnp.dot(w1m, p_ref[...],
                          preferred_element_type=f32) + b1c)    # (108, np3)
    # conv2 (3x3, s2, p1) + tanh; block-diagonal over the 4 conv3 taps so the
    # result is already ordered (t3*C2, np3).  Zero-padding folded into b2_eff.
    w2m = prm_ref[R_W2:R_W2 + T3 * C2, 0:KDIM]                  # (32, 108)
    b2e = prm_ref[R_B2:R_B2 + T3 * C2, 0:np3]                   # (32, np3)
    v4 = jnp.tanh(jnp.dot(w2m, v2,
                          preferred_element_type=f32) + b2e)    # (32, np3)
    # conv3 (2x2, s2, p1) + tanh; zero-padding folded into b3_eff.
    w3m = prm_ref[R_W3:R_W3 + C3, 0:T3 * C2]                    # (12, 32)
    b3e = prm_ref[R_B3:R_B3 + C3, 0:np3]                        # (12, np3)
    o_ref[...] = jnp.tanh(jnp.dot(w3m, v4,
                                  preferred_element_type=f32) + b3e)


# ---- composite im2col (pure XLA glue: 2 pads + 13 strided slices + stacks) ---
def _conv2_tap_stack(img):
    """img (N,H1,H1) -> (T2,N,H2,H2); tap t2=i2*3+j2 = img[2h2-1+i2, 2w2-1+j2] (0 OOB)."""
    p = jnp.pad(img, ((0, 0), (PD2, PD2), (PD2, PD2)))
    return jnp.stack([p[:, i:i + S2 * H2:S2, j:j + S2 * H2:S2]
                      for i in range(K2) for j in range(K2)], axis=0)


def _conv3_tap_stack(arr):
    """arr (...,H2,H2) -> (T3,...,H3,H3); tap t3=i3*2+j3 at (2h3-1+i3, 2w3-1+j3) (0 OOB)."""
    pad_cfg = ((0, 0),) * (arr.ndim - 2) + ((PD3, PD3), (PD3, PD3))
    p = jnp.pad(arr, pad_cfg)
    return jnp.stack([p[..., i:i + S3 * H3:S3, j:j + S3 * H3:S3]
                      for i in range(K3) for j in range(K3)], axis=0)


def _build_patches(img):
    """img (N,H1,H1) -> (NTAP, N*H3*H3) lane-dense composite im2col for the fused convs."""
    taps = _conv3_tap_stack(_conv2_tap_stack(img))       # (T3, T2, N, H3, H3)
    return taps.reshape(NTAP, -1)


# ---- one-time packing of all constants into a single VMEM slab ----------------
def prepack(params, n):
    """Builds the packed parameter slab.  Padding corrections are baked for batch `n`."""
    (w1, b1), (w2, b2), (w3, b3) = params
    np3 = n * H3 * H3
    width = max(np3, KDIM)

    # conv1 as a matmul over the 36 receptive-field taps (one C1-row block per tap).
    w1mat = jnp.kron(jnp.eye(NTAP, dtype=jnp.float32), w1.reshape(C1, 1))         # (108, 36)
    b1col = jnp.tile(b1.reshape(C1, 1), (NTAP, 1))                                # (108, 1)
    # conv2 weights, block-diagonal over the 4 conv3 taps: output rows ordered (t3, c2).
    blk2 = jnp.transpose(w2.reshape(C2, C1, T2), (0, 2, 1)).reshape(C2, T2 * C1)  # (8, 27)
    w2big = jnp.kron(jnp.eye(T3, dtype=jnp.float32), blk2)                        # (32, 108)
    # conv3 weights: columns ordered (t3, c2).
    w3p = jnp.transpose(w3.reshape(C3, C2, T3), (0, 2, 1)).reshape(C3, T3 * C2)   # (12, 32)

    # Shape-only validity indicators (1 = real data, 0 = zero padding).
    valid2 = _conv3_tap_stack(
        _conv2_tap_stack(jnp.ones((1, H1, H1), jnp.float32))).reshape(T3, T2, H3, H3)
    valid3 = _conv3_tap_stack(jnp.ones((1, H2, H2), jnp.float32)).reshape(T3, H3, H3)

    # Effective biases replacing the removed masks:
    #  - a conv2 zero-pad tap contributes tanh(b1) @ w2[t2] inside the kernel -> subtract it;
    #  - a conv3 zero-pad tap sees v4 == tanh(b2) inside the kernel -> subtract tanh(b2) @ w3[t3].
    tap2 = jnp.einsum('c,oct->ot', jnp.tanh(b1), w2.reshape(C2, C1, T2))          # (8, 9)
    corr2 = jnp.einsum('ot,kthw->kohw', tap2, 1.0 - valid2)                       # (4, 8, 8, 8)
    b2_eff = b2[None, :, None, None] - corr2                                      # (t3, c2, h3, w3)
    b2_eff = jnp.broadcast_to(b2_eff[:, :, None, :, :],
                              (T3, C2, n, H3, H3)).reshape(T3 * C2, np3)
    tap3 = jnp.einsum('c,oct->ot', jnp.tanh(b2), w3.reshape(C3, C2, T3))          # (12, 4)
    corr3 = jnp.einsum('ot,thw->ohw', tap3, 1.0 - valid3)                         # (12, 8, 8)
    b3_eff = b3[:, None, None] - corr3
    b3_eff = jnp.broadcast_to(b3_eff[:, None, :, :], (C3, n, H3, H3)).reshape(C3, np3)

    slab = jnp.zeros((PARAM_ROWS, width), jnp.float32)
    slab = slab.at[R_W1:R_W1 + KDIM, 0:NTAP].set(w1mat)
    slab = slab.at[R_W1:R_W1 + KDIM, NTAP:NTAP + 1].set(b1col)
    slab = slab.at[R_W2:R_W2 + T3 * C2, 0:KDIM].set(w2big)
    slab = slab.at[R_B2:R_B2 + T3 * C2, 0:np3].set(b2_eff)
    slab = slab.at[R_B3:R_B3 + C3, 0:np3].set(b3_eff)
    slab = slab.at[R_W3:R_W3 + C3, 0:T3 * C2].set(w3p)
    return {"slab": slab}


# ---- forward -------------------------------------------------------------------
def model_tanh_forward(x, packed):
    n = x.shape[0]
    np3 = n * H3 * H3
    # prepack() bakes the batch size into the padding corrections; shapes must match.
    assert packed["slab"].shape == (PARAM_ROWS, max(np3, KDIM)), \
        "prepack() was built for a different batch size"
    patches = _build_patches(x[:, 0, :, :])                  # (36, np3) lane-dense
    # TODO(synk): for large batches, add a ("parallel",) grid over np3 (v7x: 2 TCs,
    # 64 MiB VMEM) and consider allow_input_fusion to fold the im2col into the call.
    out = pl.pallas_call(
        _fused_conv_tanh_kernel,
        out_shape=jax.ShapeDtypeStruct((C3, np3), jnp.float32),
        in_specs=[pl.BlockSpec(memory_space=pltpu.MemorySpace.VMEM)] * 2,
        out_specs=pl.BlockSpec(memory_space=pltpu.MemorySpace.VMEM),
    )(patches, packed["slab"])
    # columns are ordered (n, h3, w3); restore the module's NCHW output layout.
    return out.reshape(C3, n, H3, H3).transpose(1, 0, 2, 3)


# ---- parameter init (PyTorch Conv2d default init) --------------------------------
def init_params(key):
    def conv_init(kw_key, kb_key, cout, cin, kh, kw):
        fan_in = cin * kh * kw
        bound = 1.0 / math.sqrt(fan_in)
        w = jax.random.uniform(kw_key, (cout, cin, kh, kw), jnp.float32, -bound, bound)
        b = jax.random.uniform(kb_key, (cout,), jnp.float32, -bound, bound)
        return w, b

    ks = jax.random.split(key, 6)
    w1, b1 = conv_init(ks[0], ks[1], C1, 1, 1, 1)
    # TODO(synk): the original module declares Conv2d(1, 8, 3, ...) which cannot consume
    # the 3-channel output of the first conv (PyTorch forward raises); in_channels fixed to 3.
    w2, b2 = conv_init(ks[2], ks[3], C2, C1, K2, K2)
    w3, b3 = conv_init(ks[4], ks[5], C3, C2, K3, K3)
    return (w1, b1), (w2, b2), (w3, b3)


# ---- pure-JAX reference ------------------------------------------------------------
def _ref_conv_tanh(x, w, b, stride, pad):
    y = jax.lax.conv_general_dilated(
        x, w, (stride, stride), [(pad, pad), (pad, pad)],
        dimension_numbers=("NCHW", "OIHW", "NCHW"))
    return jnp.tanh(y + b[None, :, None, None])


def _ref_forward(x, params):
    (w1, b1), (w2, b2), (w3, b3) = params
    y = _ref_conv_tanh(x, w1, b1, 1, 0)
    y = _ref_conv_tanh(y, w2, b2, S2, PD2)
    y = _ref_conv_tanh(y, w3, b3, S3, PD3)
    return y


if __name__ == "__main__":
    key = jax.random.PRNGKey(0)
    kx, kp = jax.random.split(key)
    x = jax.random.uniform(kx, (2, 1, 28, 28), jnp.float32)   # matches torch.rand(2,1,28,28)
    params = init_params(kp)
    packed = prepack(params, n=x.shape[0])                    # one-time, out of the hot path

    fwd = jax.jit(model_tanh_forward)
    out = jax.block_until_ready(fwd(x, packed))
    assert out.shape == (2, 12, 8, 8), out.shape

    ref = jax.block_until_ready(_ref_forward(x, params))
    assert jnp.allclose(out, ref, atol=2e-5, rtol=2e-5), float(jnp.max(jnp.abs(out - ref)))

    print("KERNEL_OK")
</pallas_src>

<mosaic_0001>
module attributes {stable_mosaic.version = 11 : i64} {
  func.func @_fused_conv_tanh_kernel(%arg0: memref<36x128xf32, #tpu.memory_space<vmem>>, %arg1: memref<208x128xf32, #tpu.memory_space<vmem>>, %arg2: memref<12x128xf32, #tpu.memory_space<vmem>>) attributes {dimension_semantics = [], scalar_prefetch = 0 : i64, scratch_operands = 0 : i64, tpu.core_type = #tpu.core_type<tc>} {
    %c0 = arith.constant 0 : index
    %c0_0 = arith.constant 0 : index
    %0 = vector.load %arg1[%c0, %c0_0] : memref<208x128xf32, #tpu.memory_space<vmem>>, vector<108x36xf32>
    %c0_1 = arith.constant 0 : index
    %c36 = arith.constant 36 : index
    %1 = vector.load %arg1[%c0_1, %c36] : memref<208x128xf32, #tpu.memory_space<vmem>>, vector<108x1xf32>
    %c0_2 = arith.constant 0 : index
    %c0_3 = arith.constant 0 : index
    %2 = vector.load %arg0[%c0_2, %c0_3] : memref<36x128xf32, #tpu.memory_space<vmem>>, vector<36x128xf32>
    %cst = arith.constant dense<0.000000e+00> : vector<108x128xf32>
    %3 = tpu.matmul %0, %2, %cst {dimension_numbers = #tpu.dot_dimension_numbers<[1], [0], [0], [1], [0, 0, 1, 1], [], []>} : vector<108x36xf32>, vector<36x128xf32>, vector<108x128xf32> -> vector<108x128xf32>
    %4 = vector.broadcast %1 : vector<108x1xf32> to vector<108x128xf32>
    %5 = arith.addf %3, %4 : vector<108x128xf32>
    %6 = math.tanh %5 : vector<108x128xf32>
    %c112 = arith.constant 112 : index
    %c0_4 = arith.constant 0 : index
    %7 = vector.load %arg1[%c112, %c0_4] : memref<208x128xf32, #tpu.memory_space<vmem>>, vector<32x108xf32>
    %c144 = arith.constant 144 : index
    %c0_5 = arith.constant 0 : index
    %8 = vector.load %arg1[%c144, %c0_5] : memref<208x128xf32, #tpu.memory_space<vmem>>, vector<32x128xf32>
    %cst_6 = arith.constant dense<0.000000e+00> : vector<32x128xf32>
    %9 = tpu.matmul %7, %6, %cst_6 {dimension_numbers = #tpu.dot_dimension_numbers<[1], [0], [0], [1], [0, 0, 1, 1], [], []>} : vector<32x108xf32>, vector<108x128xf32>, vector<32x128xf32> -> vector<32x128xf32>
    %10 = arith.addf %9, %8 : vector<32x128xf32>
    %11 = math.tanh %10 : vector<32x128xf32>
    %c192 = arith.constant 192 : index
    %c0_7 = arith.constant 0 : index
    %12 = vector.load %arg1[%c192, %c0_7] : memref<208x128xf32, #tpu.memory_space<vmem>>, vector<12x32xf32>
    %c176 = arith.constant 176 : index
    %c0_8 = arith.constant 0 : index
    %13 = vector.load %arg1[%c176, %c0_8] : memref<208x128xf32, #tpu.memory_space<vmem>>, vector<12x128xf32>
    %cst_9 = arith.constant dense<0.000000e+00> : vector<12x128xf32>
    %14 = tpu.matmul %12, %11, %cst_9 {dimension_numbers = #tpu.dot_dimension_numbers<[1], [0], [0], [1], [0, 0, 1, 1], [], []>} : vector<12x32xf32>, vector<32x128xf32>, vector<12x128xf32> -> vector<12x128xf32>
    %15 = arith.addf %14, %13 : vector<12x128xf32>
    %16 = math.tanh %15 : vector<12x128xf32>
    %c0_10 = arith.constant 0 : index
    %c0_11 = arith.constant 0 : index
    %17 = vector.load %arg2[%c0_10, %c0_11] : memref<12x128xf32, #tpu.memory_space<vmem>>, vector<12x128xf32>
    tpu.vector_store %arg2[%c0_10, %c0_11], %16 {strides = array<i32>} : memref<12x128xf32, #tpu.memory_space<vmem>>, vector<12x128xf32>,
    return
  }
}

</mosaic_0001>

<llo_original>
// kernel: model_tanh_forward.1
$region0: #{model_tanh_forward.1}
  #allocation0 [shape = 'u32[]', space=smem, size = 0x4, offset = 0x4, fixed_abs, tag = 'smem constant byte address 0x4 - core index']
  #allocation1 [shape = 'u32[72,128]{1,0:T(1,128)}', space=vmem, size = 0x9000, scoped, tag = 'internal scratch']
  %s0 = inlined_call_operand.vmem [shape: f32[36,128], index: 0, kind: input, shape index: {}]
  %s1 = inlined_call_operand.vmem [shape: f32[208,128], index: 1, kind: input, shape index: {}]
  %s2 = inlined_call_operand.vmem [shape: f32[12,128], index: 2, kind: output, shape index: {}]
  %s3 = sld [smem:[#allocation0]]
  $region18: #{model_tanh_forward.1} parent=0
    _
  %s5 = ssub.s32 1, %s3
  %s6 = scalar_select 0, %s5, %s3
  // Predicated region
  $region2: #{model_tanh_forward.1} parent=0 // pred_check
    _
  $region3: #{model_tanh_forward.1} parent=0 // pred_check_branch
    %8 = sbr.rel (0) target = $region5
  $region4: #{model_tanh_forward.1} parent=0 // pred_region
    _
  $region5: #{model_tanh_forward.1} parent=0 // pred_fallthru
    _
  // Predicated region
  $region6: #{model_tanh_forward.1} parent=0 // pred_check
    _
  $region7: #{model_tanh_forward.1} parent=0 // pred_check_branch
    %10 = sbr.rel (0) target = $region9
  $region8: #{model_tanh_forward.1} parent=0 // pred_region
    _
  $region9: #{model_tanh_forward.1} parent=0 // pred_fallthru
    _
  %v11 = vld [vmem:[%s1] sm:$0xff]
  %v12 = vld [vmem:[%s1 + $0x8] sm:$0xff]
  %v13 = vld [vmem:[%s1 + $0x10] sm:$0xff]
  %v14 = vld [vmem:[%s1 + $0x18] sm:$0xff]
  %v15 = vld [vmem:[%s1 + $0x20] sm:$0xff]
  %v16 = vld [vmem:[%s1 + $0x28] sm:$0xff]
  %v17 = vld [vmem:[%s1 + $0x30] sm:$0xff]
  %v18 = vld [vmem:[%s1 + $0x38] sm:$0xff]
  %v19 = vld [vmem:[%s1 + $0x40] sm:$0xff]
  %v20 = vld [vmem:[%s1 + $0x48] sm:$0xff]
  %v21 = vld [vmem:[%s1 + $0x50] sm:$0xff]
  %v22 = vld [vmem:[%s1 + $0x58] sm:$0xff]
  %v23 = vld [vmem:[%s1 + $0x60] sm:$0xff]
  %v24 = vld [vmem:[%s1 + $0x68] sm:$0xf]
  %v25 = vld [vmem:[%s0] sm:$0xff]
  %v26 = vld [vmem:[%s0 + $0x8] sm:$0xff]
  %v27 = vld [vmem:[%s0 + $0x10] sm:$0xff]
  %v28 = vld [vmem:[%s0 + $0x18] sm:$0xff]
  %v29 = vld [vmem:[%s0 + $0x20] sm:$0xf]
  %31 = vset.pattern.permute.xlu0 36
  %32 = vperm.xlu0 %31, %v11
  %v33 = vpop.permute.xlu0 %32
  %36 = vset.pattern.permute.xlu0 36
  %37 = vperm.xlu0 %36, %v12
  %v38 = vpop.permute.xlu0 %37
  %41 = vset.pattern.permute.xlu0 36
  %42 = vperm.xlu0 %41, %v13
  %v43 = vpop.permute.xlu0 %42
  %46 = vset.pattern.permute.xlu0 36
  %47 = vperm.xlu0 %46, %v14
  %v48 = vpop.permute.xlu0 %47
  %51 = vset.pattern.permute.xlu0 36
  %52 = vperm.xlu0 %51, %v15
  %v53 = vpop.permute.xlu0 %52
  %56 = vset.pattern.permute.xlu0 36
  %57 = vperm.xlu0 %56, %v16
  %v58 = vpop.permute.xlu0 %57
  %61 = vset.pattern.permute.xlu0 36
  %62 = vperm.xlu0 %61, %v17
  %v63 = vpop.permute.xlu0 %62
  %66 = vset.pattern.permute.xlu0 36
  %67 = vperm.xlu0 %66, %v18
  %v68 = vpop.permute.xlu0 %67
  %71 = vset.pattern.permute.xlu0 36
  %72 = vperm.xlu0 %71, %v19
  %v73 = vpop.permute.xlu0 %72
  %76 = vset.pattern.permute.xlu0 36
  %77 = vperm.xlu0 %76, %v20
  %v78 = vpop.permute.xlu0 %77
  %81 = vset.pattern.permute.xlu0 36
  %82 = vperm.xlu0 %81, %v21
  %v83 = vpop.permute.xlu0 %82
  %86 = vset.pattern.permute.xlu0 36
  %87 = vperm.xlu0 %86, %v22
  %v88 = vpop.permute.xlu0 %87
  %91 = vset.pattern.permute.xlu0 36
  %92 = vperm.xlu0 %91, %v23
  %v93 = vpop.permute.xlu0 %92
  %96 = vset.pattern.permute.xlu0 36
  %97 = vperm.xlu0 %96, %v24
  %v98 = vpop.permute.xlu0 %97
  %vm100 = vcmask 293888
  %v101 = vsel %vm100, %v11, 0
  %v103 = vsel %vm100, %v12, 0
  %v105 = vsel %vm100, %v13, 0
  %v107 = vsel %vm100, %v14, 0
  %v109 = vsel %vm100, %v15, 0
  %v111 = vsel %vm100, %v16, 0
  %v113 = vsel %vm100, %v17, 0
  %v115 = vsel %vm100, %v18, 0
  %v117 = vsel %vm100, %v19, 0
  %v119 = vsel %vm100, %v20, 0
  %v121 = vsel %vm100, %v21, 0
  %v123 = vsel %vm100, %v22, 0
  %v125 = vsel %vm100, %v23, 0
  %v127 = vsel %vm100, %v24, 0
  %vm129 = vcmask 1043456
  %v131 = vsel %vm129, %v29, 0
  %133 = vmatpush.msra.mxu0 0.0
  %134 = vmatpush.msra.mxu0 0.0
  %135 = vmatpush.msra.mxu0 0.0
  %136 = vmatpush.msra.mxu0 0.0
  %137 = vmatpush.msra.mxu0 0.0
  %138 = vmatpush.msra.mxu0 0.0
  %139 = vmatpush.msra.mxu0 0.0
  %140 = vmatpush.msra.mxu0 0.0
  %141 = vmatpush.msra.mxu0 0.0
  %142 = vmatpush.msra.mxu0 0.0
  %143 = vmatpush.msra.mxu0 0.0
  %144 = vmatpush.msra.mxu0 %v131
  %145 = vmatpush.msra.mxu0 %v28
  %146 = vmatpush.msra.mxu0 %v27
  %147 = vmatpush.msra.mxu0 %v26
  %148 = vmatpush.msra.mxu0 %v25
  %149 = vmatmul.f32.gmra.mxu0 %v101
  %v150 = vpop.f32.mrf.mxu0
  %v151 = vadd.f32 %v33, %v150
  %152 = vmatmul.f32.gmra.mxu0 %v103
  %v153 = vpop.f32.mrf.mxu0
  %v154 = vadd.f32 %v38, %v153
  %155 = vmatmul.f32.gmra.mxu0 %v105
  %v156 = vpop.f32.mrf.mxu0
  %v157 = vadd.f32 %v43, %v156
  %158 = vmatmul.f32.gmra.mxu0 %v107
  %v159 = vpop.f32.mrf.mxu0
  %v160 = vadd.f32 %v48, %v159
  %161 = vmatmul.f32.gmra.mxu0 %v109
  %v162 = vpop.f32.mrf.mxu0
  %v163 = vadd.f32 %v53, %v162
  %164 = vmatmul.f32.gmra.mxu0 %v111
  %v165 = vpop.f32.mrf.mxu0
  %v166 = vadd.f32 %v58, %v165
  %167 = vmatmul.f32.gmra.mxu0 %v113
  %v168 = vpop.f32.mrf.mxu0
  %v169 = vadd.f32 %v63, %v168
  %170 = vmatmul.f32.gmra.mxu0 %v115
  %v171 = vpop.f32.mrf.mxu0
  %v172 = vadd.f32 %v68, %v171
  %173 = vmatmul.f32.gmra.mxu0 %v117
  %v174 = vpop.f32.mrf.mxu0
  %v175 = vadd.f32 %v73, %v174
  %176 = vmatmul.f32.gmra.mxu0 %v119
  %v177 = vpop.f32.mrf.mxu0
  %v178 = vadd.f32 %v78, %v177
  %179 = vmatmul.f32.gmra.mxu0 %v121
  %v180 = vpop.f32.mrf.mxu0
  %v181 = vadd.f32 %v83, %v180
  %182 = vmatmul.f32.gmra.mxu0 %v123
  %v183 = vpop.f32.mrf.mxu0
  %v184 = vadd.f32 %v88, %v183
  %185 = vmatmul.f32.gmra.mxu0 %v125
  %v186 = vpop.f32.mrf.mxu0
  %v187 = vadd.f32 %v93, %v186
  %188 = vmatmul.f32.gmra.mxu0 %v127
  %v189 = vpop.f32.mrf.mxu0
  %v190 = vadd.f32 %v98, %v189
  %191 = vdwg.mxu0
  %v192 = vtanh.pop %v151
  %v193 = vtanh.pop %v154
  %v194 = vtanh.pop %v157
  %v195 = vtanh.pop %v160
  %v196 = vtanh.pop %v163
  %v197 = vtanh.pop %v166
  %v198 = vtanh.pop %v169
  %v199 = vtanh.pop %v172
  %v200 = vtanh.pop %v175
  %v201 = vtanh.pop %v178
  %v202 = vtanh.pop %v181
  %v203 = vtanh.pop %v184
  %v204 = vtanh.pop %v187
  %v205 = vtanh.pop %v190
  %v206 = vld [vmem:[%s1 + $0x70] sm:$0xff]
  %v207 = vld [vmem:[%s1 + $0x78] sm:$0xff]
  %v208 = vld [vmem:[%s1 + $0x80] sm:$0xff]
  %v209 = vld [vmem:[%s1 + $0x88] sm:$0xff]
  %v210 = vld [vmem:[%s1 + $0x90] sm:$0xff]
  %v211 = vld [vmem:[%s1 + $0x98] sm:$0xff]
  %v212 = vld [vmem:[%s1 + $0xa0] sm:$0xff]
  %v213 = vld [vmem:[%s1 + $0xa8] sm:$0xff]
  %vm214 = vcmask 883712
  %v216 = vsel %vm214, %v206, 0
  %v219 = vsel %vm214, %v207, 0
  %v222 = vsel %vm214, %v208, 0
  %v225 = vsel %vm214, %v209, 0
  %v228 = vsel %vm129, %v205, 0
  %230 = vmatpush.msra.mxu0 0.0
  %231 = vmatpush.msra.mxu0 0.0
  %232 = vmatpush.msra.mxu0 %v228
  %233 = vmatpush.msra.mxu0 %v204
  %234 = vmatpush.msra.mxu0 %v203
  %235 = vmatpush.msra.mxu0 %v202
  %236 = vmatpush.msra.mxu0 %v201
  %237 = vmatpush.msra.mxu0 %v200
  %238 = vmatpush.msra.mxu0 %v199
  %239 = vmatpush.msra.mxu0 %v198
  %240 = vmatpush.msra.mxu0 %v197
  %241 = vmatpush.msra.mxu0 %v196
  %242 = vmatpush.msra.mxu0 %v195
  %243 = vmatpush.msra.mxu0 %v194
  %244 = vmatpush.msra.mxu0 %v193
  %245 = vmatpush.msra.mxu0 %v192
  %246 = vmatmul.f32.gmra.mxu0 %v216
  %v247 = vpop.f32.mrf.mxu0
  %v248 = vadd.f32 %v210, %v247
  %249 = vmatmul.f32.gmra.mxu0 %v219
  %v250 = vpop.f32.mrf.mxu0
  %v251 = vadd.f32 %v211, %v250
  %252 = vmatmul.f32.gmra.mxu0 %v222
  %v253 = vpop.f32.mrf.mxu0
  %v254 = vadd.f32 %v212, %v253
  %255 = vmatmul.f32.gmra.mxu0 %v225
  %v256 = vpop.f32.mrf.mxu0
  %v257 = vadd.f32 %v213, %v256
  %258 = vdwg.mxu0
  %v259 = vtanh.pop %v248
  %v260 = vtanh.pop %v251
  %v261 = vtanh.pop %v254
  %v262 = vtanh.pop %v257
  %v263 = vld [vmem:[%s1 + $0xc0] sm:$0xff]
  %v264 = vld [vmem:[%s1 + $0xc8] sm:$0xf]
  %v265 = vld [vmem:[%s1 + $0xb0] sm:$0xff]
  %v266 = vld [vmem:[%s1 + $0xb8] sm:$0xf]
  %vm267 = vcmask 261120
  %v269 = vsel %vm267, %v263, 0
  %v272 = vsel %vm267, %v264, 0
  %274 = vmatpush.msra.mxu0 0.0
  %275 = vmatpush.msra.mxu0 0.0
  %276 = vmatpush.msra.mxu0 0.0
  %277 = vmatpush.msra.mxu0 0.0
  %278 = vmatpush.msra.mxu0 0.0
  %279 = vmatpush.msra.mxu0 0.0
  %280 = vmatpush.msra.mxu0 0.0
  %281 = vmatpush.msra.mxu0 0.0
  %282 = vmatpush.msra.mxu0 0.0
  %283 = vmatpush.msra.mxu0 0.0
  %284 = vmatpush.msra.mxu0 0.0
  %285 = vmatpush.msra.mxu0 0.0
  %286 = vmatpush.msra.mxu0 %v262
  %287 = vmatpush.msra.mxu0 %v261
  %288 = vmatpush.msra.mxu0 %v260
  %289 = vmatpush.msra.mxu0 %v259
  %290 = vmatmul.f32.gmra.mxu0 %v269
  %v291 = vpop.f32.mrf.mxu0
  %v292 = vadd.f32 %v265, %v291
  %293 = vmatmul.f32.gmra.mxu0 %v272
  %v294 = vpop.f32.mrf.mxu0
  %v295 = vadd.f32 %v266, %v294
  %296 = vdwg.mxu0
  %v297 = vtanh.pop %v292
  %v298 = vtanh.pop %v295
  %299 = vst [vmem:[%s2] sm:$0xff] %v297
  %300 = vst [vmem:[%s2 + $0x8] sm:$0xf] %v298
  // Predicated region
  $region10: #{model_tanh_forward.1} parent=0 // pred_check
    _
  $region11: #{model_tanh_forward.1} parent=0 // pred_check_branch
    %302 = sbr.rel (0) target = $region13
  $region12: #{model_tanh_forward.1} parent=0 // pred_region
    _
  $region13: #{model_tanh_forward.1} parent=0 // pred_fallthru
    _
  // Predicated region
  $region14: #{model_tanh_forward.1} parent=0 // pred_check
    _
  $region15: #{model_tanh_forward.1} parent=0 // pred_check_branch
    %304 = sbr.rel (0) target = $region17
  $region16: #{model_tanh_forward.1} parent=0 // pred_region
    _
  $region17: #{model_tanh_forward.1} parent=0 // pred_fallthru
    _

</llo_original>
